<compile_context>
chip_gen: v7x
topology: tpu7x:2x2x1
jax: 0.10.0
libtpu: 0.0.40
codegen_flags: <defaults>
</compile_context>

<pallas_src>
import math

import jax
import jax.numpy as jnp
from jax.experimental import pallas as pl
from jax.experimental.pallas import tpu as pltpu

EPS = 1e-4
_MIB = 1024 * 1024


# ----------------------------------------------------------------------------
# Kernels: one multiply + one cast per element.  The weight ref holds the
# pre-normalized channel weights tiled to lane width L, so the per-channel
# scale is purely lane-periodic and broadcasts over the whole block.
# ----------------------------------------------------------------------------
def _scale_kernel(w_ref, x_ref, o_ref):
    o_ref[...] = (x_ref[...] * w_ref[...]).astype(o_ref.dtype)


def _scale_into_kernel(w_ref, x_ref, buf_ref, o_ref):
    # buf_ref is the partially-written output buffer, aliased to this call's
    # output and kept in HBM (pl.ANY).  It is never touched here: only the
    # blocks this call visits are written back, the rest survive untouched.
    del buf_ref
    o_ref[...] = (x_ref[...] * w_ref[...]).astype(o_ref.dtype)


# ----------------------------------------------------------------------------
# Trace-time planning helpers (pure Python ints).
# ----------------------------------------------------------------------------
def _divisors(n):
    ds = set()
    i = 1
    while i * i <= n:
        if n % i == 0:
            ds.add(i)
            ds.add(n // i)
        i += 1
    return sorted(ds)


def _vmem_budget_and_limit():
    """Generation-aware VMEM sizing.

    Big tiles on 128-MiB parts (v5e/v6e), conservative on 64-MiB parts (v7x),
    always leaving headroom for Mosaic internal scratch.
    """
    cap = 64 * _MIB  # safe (v7x-sized) default if the query fails
    try:
        cap = int(getattr(pltpu.get_tpu_info(), "vmem_capacity_bytes", cap))
    except Exception:
        pass
    if cap >= 96 * _MIB:             # v5e / v6e: 128 MiB physical VMEM
        return 56 * _MIB, 96 * _MIB
    return 28 * _MIB, 48 * _MIB      # v7x: 64 MiB physical VMEM


def _sublane_quantum(itemsize):
    # f32 -> 8, bf16/f16 -> 16, int8/fp8 -> 32 (native sublane packing).
    return max(8, 32 // itemsize)


def _pick_common_lane_width(C1, C2, S0, S1):
    """Common lane width L with C1|L, C2|L, L|S0, L|S1; None if impossible.

    Prefers the smallest L that is a multiple of 128 (unmasked lane-dense
    stores); otherwise the widest L <= 1024 lanes.
    """
    base = math.lcm(C1, C2)
    if (S0 % base) or (S1 % base):
        return None
    g = math.gcd(S0 // base, S1 // base)
    divs = _divisors(g)
    dense = [base * d for d in divs if (base * d) % 128 == 0]
    if dense:
        return min(dense)
    wide = [base * d for d in divs if base * d <= 1024]
    return max(wide) if wide else base


def _pick_row_tile(rows, cap_rows, q):
    """Largest divisor of `rows` that is a sublane-quantum multiple and fits
    the VMEM row cap.  None if no legal tile exists (caller falls back)."""
    divs = _divisors(rows)
    for mult in (q, 8):
        good = [d for d in divs if d % mult == 0 and d <= cap_rows]
        if good:
            return max(good)
    return None


def _plan_fused(C1, C2, S0, S1, itemsize, budget_bytes):
    L = _pick_common_lane_width(C1, C2, S0, S1)
    if L is None:
        return None
    R0, R1 = S0 // L, S1 // L
    q = _sublane_quantum(itemsize)
    # Per step: 2 double-buffered blocks each for input and output (+ tiny
    # resident weight row) -> 4 * TR * L * itemsize bytes.
    cap_rows = max(1, budget_bytes // (4 * L * itemsize))
    tr0 = _pick_row_tile(R0, cap_rows, q)
    # Call 1's output blocks start at row R0 inside the shared (R0+R1)-row
    # buffer, so its tile must divide both R1 (coverage) and R0 (alignment).
    tr1 = _pick_row_tile(math.gcd(R0, R1), cap_rows, q)
    if tr0 is None or tr1 is None:
        return None
    return L, R0, R1, tr0, tr1


# ----------------------------------------------------------------------------
# Fallback: degenerate channel/spatial combos.  Per-input lane-dense scaling
# kernels; concat assembled outside the kernels.
# ----------------------------------------------------------------------------
def _fallback_row_tile(M, cap_rows, q):
    if M <= cap_rows:
        return M                      # full extent: always a legal block shape
    return max(q, (cap_rows // q) * q)


def _ffm_concat2_fallback(x0, x1, wn, *, N, C1, C2, H, W, itemsize, budget,
                          vmem_limit):
    # TODO(synk): the trailing jnp.concatenate is one extra HBM pass; fusing it
    # here would need element-offset (non-block-aligned) output indexing.
    HW = H * W
    q = _sublane_quantum(itemsize)
    halves = []
    for x, C, w_slice in ((x0, C1, wn[:C1]), (x1, C2, wn[C1:])):
        divs = _divisors(HW)
        dense = [C * d for d in divs if (C * d) % 128 == 0]
        if dense:
            L = min(dense)
        else:
            wide = [C * d for d in divs if C * d <= 1024]
            L = max(wide) if wide else C
        R = (C * HW) // L
        M = N * R
        cap_rows = max(q, budget // (4 * L * itemsize))
        TR = _fallback_row_tile(M, cap_rows, q)
        xv = x.reshape(M, L)
        w_row = jnp.tile(w_slice, L // C).reshape(1, L)
        y = pl.pallas_call(
            _scale_kernel,
            out_shape=jax.ShapeDtypeStruct((M, L), x.dtype),
            grid=(pl.cdiv(M, TR),),
            in_specs=[
                pl.BlockSpec((1, L), lambda i: (0, 0)),
                pl.BlockSpec((TR, L), lambda i: (i, 0)),
            ],
            out_specs=pl.BlockSpec((TR, L), lambda i: (i, 0)),
            compiler_params=pltpu.CompilerParams(
                dimension_semantics=("parallel",),
                vmem_limit_bytes=vmem_limit,
            ),
            cost_estimate=pl.CostEstimate(
                flops=M * L, transcendentals=0,
                bytes_accessed=2 * M * L * itemsize + 4 * L),
        )(w_row, xv)
        halves.append(y.reshape(N, C, H, W))
    return jnp.concatenate(halves, axis=1)


# ----------------------------------------------------------------------------
# Wrapper
# ----------------------------------------------------------------------------
def ffm_concat2(x0, x1, w, *, eps=EPS):
    """Pallas implementation of FFM_Concat2.forward([x0, x1])."""
    N, C1, H, W = x0.shape
    N2, C2, H2, W2 = x1.shape
    assert (N, H, W) == (N2, H2, W2), "batch/spatial dims must match for cat(dim=1)"
    assert x0.dtype == x1.dtype, "inputs must share a dtype"
    C_all = C1 + C2

    # Hoisted, grid-invariant weight normalization (tiny XLA op).
    wf = w[:C_all].astype(jnp.float32)
    wn = wf / (jnp.sum(wf) + eps)

    S0, S1 = C1 * H * W, C2 * H * W
    itemsize = jnp.dtype(x0.dtype).itemsize
    budget, vmem_limit = _vmem_budget_and_limit()

    plan = _plan_fused(C1, C2, S0, S1, itemsize, budget)
    if plan is None:
        return _ffm_concat2_fallback(
            x0, x1, wn, N=N, C1=C1, C2=C2, H=H, W=W,
            itemsize=itemsize, budget=budget, vmem_limit=vmem_limit)

    L, R0, R1, TR0, TR1 = plan
    T0, T1 = R0 // TR0, R1 // TR1
    off1 = R0 // TR1          # first output row-block of the x1-derived half

    # Lane-dense views (C-order reshape == torch .view of contiguous NCHW).
    x0v = x0.reshape(N, R0, L)
    x1v = x1.reshape(N, R1, L)
    # Pre-tiled, pre-normalized weight rows (periodic in C1 / C2).
    w0t = jnp.tile(wn[:C1], L // C1).reshape(1, 1, L)
    w1t = jnp.tile(wn[C1:], L // C2).reshape(1, 1, L)

    out_shape = jax.ShapeDtypeStruct((N, R0 + R1, L), x0.dtype)
    # NOTE(v7x): both axes "parallel" so the grid can shard across both
    # TensorCores; switch the leading axis to pltpu.CORE_PARALLEL only if
    # profiling shows a single TC busy.
    cparams = pltpu.CompilerParams(
        dimension_semantics=("parallel", "parallel"),
        vmem_limit_bytes=vmem_limit,
    )

    # Call 0: x0-derived half -> rows [0, R0) of every sample's flat region.
    y_half = pl.pallas_call(
        _scale_kernel,
        out_shape=out_shape,
        grid=(N, T0),
        in_specs=[
            pl.BlockSpec((1, 1, L), lambda n, j: (0, 0, 0)),     # w0 (resident)
            pl.BlockSpec((1, TR0, L), lambda n, j: (n, j, 0)),   # x0 block
        ],
        out_specs=pl.BlockSpec((1, TR0, L), lambda n, j: (n, j, 0)),
        compiler_params=cparams,
        cost_estimate=pl.CostEstimate(
            flops=N * S0, transcendentals=0,
            bytes_accessed=2 * N * S0 * itemsize + 4 * L),
    )(w0t, x0v)

    # Call 1: x1-derived half -> rows [R0, R0+R1); the y0 blocks written by
    # call 0 survive through input_output_aliases (no re-init, no concat pass).
    out_flat = pl.pallas_call(
        _scale_into_kernel,
        out_shape=out_shape,
        grid=(N, T1),
        in_specs=[
            pl.BlockSpec((1, 1, L), lambda n, j: (0, 0, 0)),     # w1 (resident)
            pl.BlockSpec((1, TR1, L), lambda n, j: (n, j, 0)),   # x1 block
            pl.BlockSpec(memory_space=pl.ANY),                   # aliased output
        ],
        out_specs=pl.BlockSpec((1, TR1, L), lambda n, j: (n, off1 + j, 0)),
        input_output_aliases={2: 0},
        compiler_params=cparams,
        cost_estimate=pl.CostEstimate(
            flops=N * S1, transcendentals=0,
            bytes_accessed=2 * N * S1 * itemsize + 4 * L),
    )(w1t, x1v, y_half)

    # Free metadata reshape: the flat buffer already has NCHW-concat layout.
    return out_flat.reshape(N, C_all, H, W)


def ffm_concat2_ref(x0, x1, w, *, eps=EPS):
    """Pure-JAX reference matching the PyTorch forward exactly."""
    N, C1, H, W = x0.shape
    _, C2, _, _ = x1.shape
    ww = w[: C1 + C2].astype(jnp.float32)
    weight = ww / (jnp.sum(ww) + eps)
    y0 = (weight[:C1] * x0.reshape(N, H, W, C1)).reshape(N, C1, H, W)
    y1 = (weight[C1:] * x1.reshape(N, H, W, C2)).reshape(N, C2, H, W)
    return jnp.concatenate([y0, y1], axis=1).astype(x0.dtype)


if __name__ == "__main__":
    key = jax.random.PRNGKey(0)
    k0, k1 = jax.random.split(key)

    N, C1, C2, H, W = 2, 4, 8, 16, 16
    x0 = jax.random.normal(k0, (N, C1, H, W), dtype=jnp.float32)
    x1 = jax.random.normal(k1, (N, C2, H, W), dtype=jnp.float32)

    # Deterministic parameter init (module init is ones; perturb so each
    # channel gets a distinct normalized weight).
    w = jnp.ones((C1 + C2,), dtype=jnp.float32) + 0.05 * jnp.arange(
        C1 + C2, dtype=jnp.float32
    )

    fn = jax.jit(ffm_concat2)
    out = jax.block_until_ready(fn(x0, x1, w))
    ref = jax.block_until_ready(ffm_concat2_ref(x0, x1, w))

    assert out.shape == (N, C1 + C2, H, W), out.shape
    assert jnp.allclose(out, ref, atol=1e-6, rtol=1e-6), float(
        jnp.max(jnp.abs(out - ref))
    )

    print("KERNEL_OK")
</pallas_src>

<mosaic_0001>
module attributes {stable_mosaic.version = 11 : i64} {
  func.func @_scale_kernel(%arg0: i32, %arg1: i32, %arg2: memref<1x1x128xf32, #tpu.memory_space<vmem>>, %arg3: memref<1x8x128xf32, #tpu.memory_space<vmem>>, %arg4: memref<1x8x128xf32, #tpu.memory_space<vmem>>) attributes {dimension_semantics = [#tpu.dimension_semantics<parallel>, #tpu.dimension_semantics<parallel>], iteration_bounds = array<i64: 2, 1>, scalar_prefetch = 0 : i64, scratch_operands = 0 : i64, tpu.core_type = #tpu.core_type<tc>, window_params = [{pipeline_mode = #tpu.pipeline_mode<synchronous>, transform_indices = @transform_0, window_bounds = array<i64: 1, 1, 128>}, {transform_indices = @transform_1, window_bounds = array<i64: 1, 8, 128>}, {transform_indices = @transform_2, window_bounds = array<i64: 1, 8, 128>}]} {
    %c0 = arith.constant 0 : index
    %c0_0 = arith.constant 0 : index
    %c0_1 = arith.constant 0 : index
    %0 = vector.load %arg3[%c0, %c0_0, %c0_1] : memref<1x8x128xf32, #tpu.memory_space<vmem>>, vector<1x8x128xf32>
    %c0_2 = arith.constant 0 : index
    %c0_3 = arith.constant 0 : index
    %c0_4 = arith.constant 0 : index
    %1 = vector.load %arg2[%c0_2, %c0_3, %c0_4] : memref<1x1x128xf32, #tpu.memory_space<vmem>>, vector<1x1x128xf32>
    %2 = vector.broadcast %1 : vector<1x1x128xf32> to vector<1x8x128xf32>
    %3 = arith.mulf %0, %2 : vector<1x8x128xf32>
    %c0_5 = arith.constant 0 : index
    %c0_6 = arith.constant 0 : index
    %c0_7 = arith.constant 0 : index
    %4 = vector.load %arg4[%c0_5, %c0_6, %c0_7] : memref<1x8x128xf32, #tpu.memory_space<vmem>>, vector<1x8x128xf32>
    tpu.vector_store %arg4[%c0_5, %c0_6, %c0_7], %3 {strides = array<i32>} : memref<1x8x128xf32, #tpu.memory_space<vmem>>, vector<1x8x128xf32>,
    return
  }
  func.func @transform_0(%arg0: i32, %arg1: i32) -> (i32, i32, i32) {
    %c0_i32 = arith.constant 0 : i32
    %c0_i32_0 = arith.constant 0 : i32
    %c0_i32_1 = arith.constant 0 : i32
    %c0_i32_2 = arith.constant 0 : i32
    return %c0_i32, %c0_i32_0, %c0_i32_1 : i32, i32, i32
  }
  func.func @transform_1(%arg0: i32, %arg1: i32) -> (i32, i32, i32) {
    %c0_i32 = arith.constant 0 : i32
    %c0_i32_0 = arith.constant 0 : i32
    return %arg0, %arg1, %c0_i32 : i32, i32, i32
  }
  func.func @transform_2(%arg0: i32, %arg1: i32) -> (i32, i32, i32) {
    %c0_i32 = arith.constant 0 : i32
    %c0_i32_0 = arith.constant 0 : i32
    return %arg0, %arg1, %c0_i32 : i32, i32, i32
  }
}

module attributes {stable_mosaic.version = 11 : i64} {
  func.func @_scale_into_kernel(%arg0: i32, %arg1: i32, %arg2: memref<1x1x128xf32, #tpu.memory_space<vmem>>, %arg3: memref<1x8x128xf32, #tpu.memory_space<vmem>>, %arg4: memref<2x24x128xf32, #tpu.memory_space<any>>, %arg5: memref<1x8x128xf32, #tpu.memory_space<vmem>>) attributes {dimension_semantics = [#tpu.dimension_semantics<parallel>, #tpu.dimension_semantics<parallel>], iteration_bounds = array<i64: 2, 2>, scalar_prefetch = 0 : i64, scratch_operands = 0 : i64, tpu.core_type = #tpu.core_type<tc>, window_params = [{pipeline_mode = #tpu.pipeline_mode<synchronous>, transform_indices = @transform_0, window_bounds = array<i64: 1, 1, 128>}, {transform_indices = @transform_1, window_bounds = array<i64: 1, 8, 128>}, {}, {transform_indices = @transform_3, window_bounds = array<i64: 1, 8, 128>}]} {
    %c0 = arith.constant 0 : index
    %c0_0 = arith.constant 0 : index
    %c0_1 = arith.constant 0 : index
    %0 = vector.load %arg3[%c0, %c0_0, %c0_1] : memref<1x8x128xf32, #tpu.memory_space<vmem>>, vector<1x8x128xf32>
    %c0_2 = arith.constant 0 : index
    %c0_3 = arith.constant 0 : index
    %c0_4 = arith.constant 0 : index
    %1 = vector.load %arg2[%c0_2, %c0_3, %c0_4] : memref<1x1x128xf32, #tpu.memory_space<vmem>>, vector<1x1x128xf32>
    %2 = vector.broadcast %1 : vector<1x1x128xf32> to vector<1x8x128xf32>
    %3 = arith.mulf %0, %2 : vector<1x8x128xf32>
    %c0_5 = arith.constant 0 : index
    %c0_6 = arith.constant 0 : index
    %c0_7 = arith.constant 0 : index
    %4 = vector.load %arg5[%c0_5, %c0_6, %c0_7] : memref<1x8x128xf32, #tpu.memory_space<vmem>>, vector<1x8x128xf32>
    tpu.vector_store %arg5[%c0_5, %c0_6, %c0_7], %3 {strides = array<i32>} : memref<1x8x128xf32, #tpu.memory_space<vmem>>, vector<1x8x128xf32>,
    return
  }
  func.func @transform_0(%arg0: i32, %arg1: i32) -> (i32, i32, i32) {
    %c0_i32 = arith.constant 0 : i32
    %c0_i32_0 = arith.constant 0 : i32
    %c0_i32_1 = arith.constant 0 : i32
    %c0_i32_2 = arith.constant 0 : i32
    return %c0_i32, %c0_i32_0, %c0_i32_1 : i32, i32, i32
  }
  func.func @transform_1(%arg0: i32, %arg1: i32) -> (i32, i32, i32) {
    %c0_i32 = arith.constant 0 : i32
    %c0_i32_0 = arith.constant 0 : i32
    return %arg0, %arg1, %c0_i32 : i32, i32, i32
  }
  func.func @transform_3(%arg0: i32, %arg1: i32) -> (i32, i32, i32) {
    %c1_i32 = arith.constant 1 : i32
    %0 = arith.addi %c1_i32, %arg1 : i32
    %c0_i32 = arith.constant 0 : i32
    %c0_i32_0 = arith.constant 0 : i32
    return %arg0, %0, %c0_i32 : i32, i32, i32
  }
}

</mosaic_0001>

<llo_original>
// kernel: tile.18
$region0: #{tile.18}
  #allocation0 [shape = 's32[1]{0}', space=sflag, size = 0x4, scoped, tag = 'scoped memory for tile.18']
  %s0 = inlined_call_operand.vmem [shape: f32[8], index: 0, kind: input, shape index: {}]
  %s1 = inlined_call_operand.vmem [shape: f32[16,8], index: 1, kind: output, shape index: {}]
  // Predicated region
  $region2: #{tile.18} parent=0 // pred_check
    _
  $region3: #{tile.18} parent=0 // pred_check_branch
    %3 = sbr.rel (0) target = $region5
  $region4: #{tile.18} parent=0 // pred_region
    _
  $region5: #{tile.18} parent=0 // pred_fallthru
    _
  %v4 = vld [vmem:[%s0] ss:$0 sm:$0xff]
  %5 = vst [vmem:[%s1] sm:$0xff] %v4
  %s6 = scalar_lea.vmem %s1, 8
  %7 = vst [vmem:[%s6] sm:$0xff] %v4

// kernel: tile.13
$region0: #{tile.13}
  #allocation0 [shape = 's32[1]{0}', space=sflag, size = 0x4, scoped, tag = 'scoped memory for tile.13']
  %s0 = inlined_call_operand.vmem [shape: f32[4], index: 0, kind: input, shape index: {}]
  %s1 = inlined_call_operand.vmem [shape: f32[32,4], index: 1, kind: output, shape index: {}]
  // Predicated region
  $region2: #{tile.13} parent=0 // pred_check
    _
  $region3: #{tile.13} parent=0 // pred_check_branch
    %3 = sbr.rel (0) target = $region5
  $region4: #{tile.13} parent=0 // pred_region
    _
  $region5: #{tile.13} parent=0 // pred_fallthru
    _
  %v4 = vld [vmem:[%s0] ss:$0 sm:$0xff]
  %5 = vst [vmem:[%s1] sm:$0xff] %v4
  %s6 = scalar_lea.vmem %s1, 8
  %7 = vst [vmem:[%s6] sm:$0xff] %v4
  %s8 = scalar_lea.vmem %s1, 16
  %9 = vst [vmem:[%s8] sm:$0xff] %v4
  %s10 = scalar_lea.vmem %s1, 24
  %11 = vst [vmem:[%s10] sm:$0xff] %v4

// kernel: tile.19
$region0: #{tile.19}
  %s0 = inlined_call_operand.vmem [shape: f32[16,8], index: 0, kind: input, shape index: {}]
  %s1 = inlined_call_operand.vmem [shape: f32[1,1,128], index: 1, kind: output, shape index: {}]
  $region1: #{tile.19} parent=0
    #allocation0 [shape = 'u8[4096]{0}', space=vmem, size = 0x1000, scoped, tag = 'scoped mem for output reshape']
    %v2 = vld [vmem:[%s0] sm:$0x1]
    %vm3 = vcmask 64512
    %4 = vst.msk [vmem:[#allocation0] sm:$0x1] %vm3, %v2
    %s5 = scalar_lea.vmem %s0, 15
    %v6 = vld [vmem:[%s5] sm:$0x1]
    %7 = vrot.lane.b32.xlu0 %v6, 120
    %v8 = vpop.permute.xlu0 %7
    %vm9 = vcmask 1048512
    %10 = vst.msk [vmem:[#allocation0] sm:$0x1] %vm9, %v8
    %s11 = scalar_lea.vmem %s0, 14
    %v12 = vld [vmem:[%s11] sm:$0x1]
    %13 = vrot.lane.b32.xlu0 %v12, 112
    %v14 = vpop.permute.xlu0 %13
    %vm15 = vcmask 982912
    %16 = vst.msk [vmem:[#allocation0] sm:$0x1] %vm15, %v14
    %s17 = scalar_lea.vmem %s0, 13
    %v18 = vld [vmem:[%s17] sm:$0x1]
    %19 = vrot.lane.b32.xlu0 %v18, 104
    %v20 = vpop.permute.xlu0 %19
    %vm21 = vcmask 917312
    %22 = vst.msk [vmem:[#allocation0] sm:$0x1] %vm21, %v20
    %s23 = scalar_lea.vmem %s0, 12
    %v24 = vld [vmem:[%s23] sm:$0x1]
    %25 = vrot.lane.b32.xlu0 %v24, 96
    %v26 = vpop.permute.xlu0 %25
    %vm27 = vcmask 851712
    %28 = vst.msk [vmem:[#allocation0] sm:$0x1] %vm27, %v26
    %s29 = scalar_lea.vmem %s0, 11
    %v30 = vld [vmem:[%s29] sm:$0x1]
    %31 = vrot.lane.b32.xlu0 %v30, 88
    %v32 = vpop.permute.xlu0 %31
    %vm33 = vcmask 786112
    %34 = vst.msk [vmem:[#allocation0] sm:$0x1] %vm33, %v32
    %s35 = scalar_lea.vmem %s0, 10
    %v36 = vld [vmem:[%s35] sm:$0x1]
    %37 = vrot.lane.b32.xlu0 %v36, 80
    %v38 = vpop.permute.xlu0 %37
    %vm39 = vcmask 720512
    %40 = vst.msk [vmem:[#allocation0] sm:$0x1] %vm39, %v38
    %s41 = scalar_lea.vmem %s0, 9
    %v42 = vld [vmem:[%s41] sm:$0x1]
    %43 = vrot.lane.b32.xlu0 %v42, 72
    %v44 = vpop.permute.xlu0 %43
    %vm45 = vcmask 654912
    %46 = vst.msk [vmem:[#allocation0] sm:$0x1] %vm45, %v44
    %s47 = scalar_lea.vmem %s0, 8
    %v48 = vld [vmem:[%s47] sm:$0x1]
    %49 = vrot.lane.b32.xlu0 %v48, 64
    %v50 = vpop.permute.xlu0 %49
    %vm51 = vcmask 589312
    %52 = vst.msk [vmem:[#allocation0] sm:$0x1] %vm51, %v50
    %s53 = scalar_lea.vmem %s0, 7
    %v54 = vld [vmem:[%s53] sm:$0x1]
    %55 = vrot.lane.b32.xlu0 %v54, 56
    %v56 = vpop.permute.xlu0 %55
    %vm57 = vcmask 523712
    %58 = vst.msk [vmem:[#allocation0] sm:$0x1] %vm57, %v56
    %s59 = scalar_lea.vmem %s0, 6
    %v60 = vld [vmem:[%s59] sm:$0x1]
    %61 = vrot.lane.b32.xlu0 %v60, 48
    %v62 = vpop.permute.xlu0 %61
    %vm63 = vcmask 458112
    %64 = vst.msk [vmem:[#allocation0] sm:$0x1] %vm63, %v62
    %s65 = scalar_lea.vmem %s0, 5
    %v66 = vld [vmem:[%s65] sm:$0x1]
    %67 = vrot.lane.b32.xlu0 %v66, 40
    %v68 = vpop.permute.xlu0 %67
    %vm69 = vcmask 392512
    %70 = vst.msk [vmem:[#allocation0] sm:$0x1] %vm69, %v68
    %s71 = scalar_lea.vmem %s0, 4
    %v72 = vld [vmem:[%s71] sm:$0x1]
    %73 = vrot.lane.b32.xlu0 %v72, 32
    %v74 = vpop.permute.xlu0 %73
    %vm75 = vcmask 326912
    %76 = vst.msk [vmem:[#allocation0] sm:$0x1] %vm75, %v74
    %s77 = scalar_lea.vmem %s0, 3
    %v78 = vld [vmem:[%s77] sm:$0x1]
    %79 = vrot.lane.b32.xlu0 %v78, 24
    %v80 = vpop.permute.xlu0 %79
    %vm81 = vcmask 261312
    %82 = vst.msk [vmem:[#allocation0] sm:$0x1] %vm81, %v80
    %s83 = scalar_lea.vmem %s0, 2
    %v84 = vld [vmem:[%s83] sm:$0x1]
    %85 = vrot.lane.b32.xlu0 %v84, 16
    %v86 = vpop.permute.xlu0 %85
    %vm87 = vcmask 195712
    %88 = vst.msk [vmem:[#allocation0] sm:$0x1] %vm87, %v86
    %s89 = scalar_lea.vmem %s0, 1
    %v90 = vld [vmem:[%s89] sm:$0x1]
    %91 = vrot.lane.b32.xlu0 %v90, 8
    %v92 = vpop.permute.xlu0 %91
    %vm93 = vcmask 130112
    %94 = vst.msk [vmem:[#allocation0] sm:$0x1] %vm93, %v92
    %s96 = sshllo.u32 0, 1
    %v98 = vld [vmem:[#allocation0] sm:%s96]
    %s99 = sshllo.u32 0, 1
    %100 = vst [vmem:[%s1] sm:%s99] %v98

// kernel: tile.14
$region0: #{tile.14}
  %s0 = inlined_call_operand.vmem [shape: f32[32,4], index: 0, kind: input, shape index: {}]
  %s1 = inlined_call_operand.vmem [shape: f32[1,1,128], index: 1, kind: output, shape index: {}]
  $region1: #{tile.14} parent=0
    #allocation0 [shape = 'u8[4096]{0}', space=vmem, size = 0x1000, scoped, tag = 'scoped mem for output reshape']
    %v2 = vld [vmem:[%s0] sm:$0x1]
    %vm3 = vcmask 31744
    %4 = vst.msk [vmem:[#allocation0] sm:$0x1] %vm3, %v2
    %s5 = scalar_lea.vmem %s0, 31
    %v6 = vld [vmem:[%s5] sm:$0x1]
    %7 = vrot.lane.b32.xlu0 %v6, 124
    %v8 = vpop.permute.xlu0 %7
    %vm9 = vcmask 1048544
    %10 = vst.msk [vmem:[#allocation0] sm:$0x1] %vm9, %v8
    %s11 = scalar_lea.vmem %s0, 30
    %v12 = vld [vmem:[%s11] sm:$0x1]
    %13 = vrot.lane.b32.xlu0 %v12, 120
    %v14 = vpop.permute.xlu0 %13
    %vm15 = vcmask 1015744
    %16 = vst.msk [vmem:[#allocation0] sm:$0x1] %vm15, %v14
    %s17 = scalar_lea.vmem %s0, 29
    %v18 = vld [vmem:[%s17] sm:$0x1]
    %19 = vrot.lane.b32.xlu0 %v18, 116
    %v20 = vpop.permute.xlu0 %19
    %vm21 = vcmask 982944
    %22 = vst.msk [vmem:[#allocation0] sm:$0x1] %vm21, %v20
    %s23 = scalar_lea.vmem %s0, 28
    %v24 = vld [vmem:[%s23] sm:$0x1]
    %25 = vrot.lane.b32.xlu0 %v24, 112
    %v26 = vpop.permute.xlu0 %25
    %vm27 = vcmask 950144
    %28 = vst.msk [vmem:[#allocation0] sm:$0x1] %vm27, %v26
    %s29 = scalar_lea.vmem %s0, 27
    %v30 = vld [vmem:[%s29] sm:$0x1]
    %31 = vrot.lane.b32.xlu0 %v30, 108
    %v32 = vpop.permute.xlu0 %31
    %vm33 = vcmask 917344
    %34 = vst.msk [vmem:[#allocation0] sm:$0x1] %vm33, %v32
    %s35 = scalar_lea.vmem %s0, 26
    %v36 = vld [vmem:[%s35] sm:$0x1]
    %37 = vrot.lane.b32.xlu0 %v36, 104
    %v38 = vpop.permute.xlu0 %37
    %vm39 = vcmask 884544
    %40 = vst.msk [vmem:[#allocation0] sm:$0x1] %vm39, %v38
    %s41 = scalar_lea.vmem %s0, 25
    %v42 = vld [vmem:[%s41] sm:$0x1]
    %43 = vrot.lane.b32.xlu0 %v42, 100
    %v44 = vpop.permute.xlu0 %43
    %vm45 = vcmask 851744
    %46 = vst.msk [vmem:[#allocation0] sm:$0x1] %vm45, %v44
    %s47 = scalar_lea.vmem %s0, 24
    %v48 = vld [vmem:[%s47] sm:$0x1]
    %49 = vrot.lane.b32.xlu0 %v48, 96
    %v50 = vpop.permute.xlu0 %49
    %vm51 = vcmask 818944
    %52 = vst.msk [vmem:[#allocation0] sm:$0x1] %vm51, %v50
    %s53 = scalar_lea.vmem %s0, 23
    %v54 = vld [vmem:[%s53] sm:$0x1]
    %55 = vrot.lane.b32.xlu0 %v54, 92
    %v56 = vpop.permute.xlu0 %55
    %vm57 = vcmask 786144
    %58 = vst.msk [vmem:[#allocation0] sm:$0x1] %vm57, %v56
    %s59 = scalar_lea.vmem %s0, 22
    %v60 = vld [vmem:[%s59] sm:$0x1]
    %61 = vrot.lane.b32.xlu0 %v60, 88
    %v62 = vpop.permute.xlu0 %61
    %vm63 = vcmask 753344
    %64 = vst.msk [vmem:[#allocation0] sm:$0x1] %vm63, %v62
    %s65 = scalar_lea.vmem %s0, 21
    %v66 = vld [vmem:[%s65] sm:$0x1]
    %67 = vrot.lane.b32.xlu0 %v66, 84
    %v68 = vpop.permute.xlu0 %67
    %vm69 = vcmask 720544
    %70 = vst.msk [vmem:[#allocation0] sm:$0x1] %vm69, %v68
    %s71 = scalar_lea.vmem %s0, 20
    %v72 = vld [vmem:[%s71] sm:$0x1]
    %73 = vrot.lane.b32.xlu0 %v72, 80
    %v74 = vpop.permute.xlu0 %73
    %vm75 = vcmask 687744
    %76 = vst.msk [vmem:[#allocation0] sm:$0x1] %vm75, %v74
    %s77 = scalar_lea.vmem %s0, 19
    %v78 = vld [vmem:[%s77] sm:$0x1]
    %79 = vrot.lane.b32.xlu0 %v78, 76
    %v80 = vpop.permute.xlu0 %79
    %vm81 = vcmask 654944
    %82 = vst.msk [vmem:[#allocation0] sm:$0x1] %vm81, %v80
    %s83 = scalar_lea.vmem %s0, 18
    %v84 = vld [vmem:[%s83] sm:$0x1]
    %85 = vrot.lane.b32.xlu0 %v84, 72
    %v86 = vpop.permute.xlu0 %85
    %vm87 = vcmask 622144
    %88 = vst.msk [vmem:[#allocation0] sm:$0x1] %vm87, %v86
    %s89 = scalar_lea.vmem %s0, 17
    %v90 = vld [vmem:[%s89] sm:$0x1]
    %91 = vrot.lane.b32.xlu0 %v90, 68
    %v92 = vpop.permute.xlu0 %91
    %vm93 = vcmask 589344
    %94 = vst.msk [vmem:[#allocation0] sm:$0x1] %vm93, %v92
    %s95 = scalar_lea.vmem %s0, 16
    %v96 = vld [vmem:[%s95] sm:$0x1]
    %97 = vrot.lane.b32.xlu0 %v96, 64
    %v98 = vpop.permute.xlu0 %97
    %vm99 = vcmask 556544
    %100 = vst.msk [vmem:[#allocation0] sm:$0x1] %vm99, %v98
    %s101 = scalar_lea.vmem %s0, 15
    %v102 = vld [vmem:[%s101] sm:$0x1]
    %103 = vrot.lane.b32.xlu0 %v102, 60
    %v104 = vpop.permute.xlu0 %103
    %vm105 = vcmask 523744
    %106 = vst.msk [vmem:[#allocation0] sm:$0x1] %vm105, %v104
    %s107 = scalar_lea.vmem %s0, 14
    %v108 = vld [vmem:[%s107] sm:$0x1]
    %109 = vrot.lane.b32.xlu0 %v108, 56
    %v110 = vpop.permute.xlu0 %109
    %vm111 = vcmask 490944
    %112 = vst.msk [vmem:[#allocation0] sm:$0x1] %vm111, %v110
    %s113 = scalar_lea.vmem %s0, 13
    %v114 = vld [vmem:[%s113] sm:$0x1]
    %115 = vrot.lane.b32.xlu0 %v114, 52
    %v116 = vpop.permute.xlu0 %115
    %vm117 = vcmask 458144
    %118 = vst.msk [vmem:[#allocation0] sm:$0x1] %vm117, %v116
    %s119 = scalar_lea.vmem %s0, 12
    %v120 = vld [vmem:[%s119] sm:$0x1]
    %121 = vrot.lane.b32.xlu0 %v120, 48
    %v122 = vpop.permute.xlu0 %121
    %vm123 = vcmask 425344
    %124 = vst.msk [vmem:[#allocation0] sm:$0x1] %vm123, %v122
    %s125 = scalar_lea.vmem %s0, 11
    %v126 = vld [vmem:[%s125] sm:$0x1]
    %127 = vrot.lane.b32.xlu0 %v126, 44
    %v128 = vpop.permute.xlu0 %127
    %vm129 = vcmask 392544
    %130 = vst.msk [vmem:[#allocation0] sm:$0x1] %vm129, %v128
    %s131 = scalar_lea.vmem %s0, 10
    %v132 = vld [vmem:[%s131] sm:$0x1]
    %133 = vrot.lane.b32.xlu0 %v132, 40
    %v134 = vpop.permute.xlu0 %133
    %vm135 = vcmask 359744
    %136 = vst.msk [vmem:[#allocation0] sm:$0x1] %vm135, %v134
    %s137 = scalar_lea.vmem %s0, 9
    %v138 = vld [vmem:[%s137] sm:$0x1]
    %139 = vrot.lane.b32.xlu0 %v138, 36
    %v140 = vpop.permute.xlu0 %139
    %vm141 = vcmask 326944
    %142 = vst.msk [vmem:[#allocation0] sm:$0x1] %vm141, %v140
    %s143 = scalar_lea.vmem %s0, 8
    %v144 = vld [vmem:[%s143] sm:$0x1]
    %145 = vrot.lane.b32.xlu0 %v144, 32
    %v146 = vpop.permute.xlu0 %145
    %vm147 = vcmask 294144
    %148 = vst.msk [vmem:[#allocation0] sm:$0x1] %vm147, %v146
    %s149 = scalar_lea.vmem %s0, 7
    %v150 = vld [vmem:[%s149] sm:$0x1]
    %151 = vrot.lane.b32.xlu0 %v150, 28
    %v152 = vpop.permute.xlu0 %151
    %vm153 = vcmask 261344
    %154 = vst.msk [vmem:[#allocation0] sm:$0x1] %vm153, %v152
    %s155 = scalar_lea.vmem %s0, 6
    %v156 = vld [vmem:[%s155] sm:$0x1]
    %157 = vrot.lane.b32.xlu0 %v156, 24
    %v158 = vpop.permute.xlu0 %157
    %vm159 = vcmask 228544
    %160 = vst.msk [vmem:[#allocation0] sm:$0x1] %vm159, %v158
    %s161 = scalar_lea.vmem %s0, 5
    %v162 = vld [vmem:[%s161] sm:$0x1]
    %163 = vrot.lane.b32.xlu0 %v162, 20
    %v164 = vpop.permute.xlu0 %163
    %vm165 = vcmask 195744
    %166 = vst.msk [vmem:[#allocation0] sm:$0x1] %vm165, %v164
    %s167 = scalar_lea.vmem %s0, 4
    %v168 = vld [vmem:[%s167] sm:$0x1]
    %169 = vrot.lane.b32.xlu0 %v168, 16
    %v170 = vpop.permute.xlu0 %169
    %vm171 = vcmask 162944
    %172 = vst.msk [vmem:[#allocation0] sm:$0x1] %vm171, %v170
    %s173 = scalar_lea.vmem %s0, 3
    %v174 = vld [vmem:[%s173] sm:$0x1]
    %175 = vrot.lane.b32.xlu0 %v174, 12
    %v176 = vpop.permute.xlu0 %175
    %vm177 = vcmask 130144
    %178 = vst.msk [vmem:[#allocation0] sm:$0x1] %vm177, %v176
    %s179 = scalar_lea.vmem %s0, 2
    %v180 = vld [vmem:[%s179] sm:$0x1]
    %181 = vrot.lane.b32.xlu0 %v180, 8
    %v182 = vpop.permute.xlu0 %181
    %vm183 = vcmask 97344
    %184 = vst.msk [vmem:[#allocation0] sm:$0x1] %vm183, %v182
    %s185 = scalar_lea.vmem %s0, 1
    %v186 = vld [vmem:[%s185] sm:$0x1]
    %187 = vrot.lane.b32.xlu0 %v186, 4
    %v188 = vpop.permute.xlu0 %187
    %vm189 = vcmask 64544
    %190 = vst.msk [vmem:[#allocation0] sm:$0x1] %vm189, %v188
    %s192 = sshllo.u32 0, 1
    %v194 = vld [vmem:[#allocation0] sm:%s192]
    %s195 = sshllo.u32 0, 1
    %196 = vst [vmem:[%s1] sm:%s195] %v194

// kernel: ffm_concat2.3
$region0: #{ffm_concat2.3}
  #allocation0 [shape = 'u32[]', space=smem, size = 0x4, offset = 0x4, fixed_abs, tag = 'smem constant byte address 0x4 - core index']
  #allocation1 [shape = 'u32[144,128]{1,0:T(1,128)}', space=vmem, size = 0x12000, scoped, tag = 'internal scratch']
  %s0 = inlined_call_operand.vmem [shape: f32[1,1,128], index: 0, kind: input, shape index: {}]
  %s1 = inlined_call_operand.vmem [shape: f32[2,16,128], index: 1, kind: input, shape index: {}]
  %s2 = inlined_call_operand.vmem [shape: f32[2,24,128], index: 2, kind: input, shape index: {}, may-alias: {2,3}]
  %s3 = inlined_call_operand.vmem [shape: f32[2,24,128], index: 3, kind: output, shape index: {}, may-alias: {2,3}]
  %s4 = sld [smem:[#allocation0]]
  $region41: #{ffm_concat2.3} parent=0
    _
  %s6 = ssub.s32 1, %s4
  %s7 = scalar_select 0, %s6, %s4
  loop: start=0, step=1, limit=6
  $region2: #{ffm_concat2.3} parent=0 // loop_pre_header
    _
  $region3: #{ffm_concat2.3} parent=0 // loop_header
    %s9 = sphi 0, %s13
    %p10 = scmp.ge.s32.totalorder %s9, 6
    %s16 = sphi 0, %s28
    %s17 = sphi 0, %s24
    %s18 = sphi 0, %s16
    %s19 = sphi 0, %s17
    %s20 = sphi 0, %s18
    %s21 = sphi 0, %s19
    %s29 = sphi 0, %s29
    %s31 = sphi 0, %s29
    %s32 = sphi 0, %s31
    %s46 = sphi 0, %s32
    %s54 = sphi 0, %s56
    %s57 = sphi 0, %s54
    %s58 = sphi 0, %s57
    %s74 = sphi 0, %s58
    %s84 = sphi 0, %s86
    %s87 = sphi 0, %s84
    %s88 = sphi 0, %s87
    %s104 = sphi 0, %s88
  $region4: #{ffm_concat2.3} parent=0 // loop_header_branch
    %12 = sbr.rel (%p10) target = $region8
  $region5: #{ffm_concat2.3} parent=0 // loop_body
    %s14 = ssub.s32 %s9, 1
    %s15 = ssub.s32 %s9, 2
    %s22 = sadd.s32 1, %s17
    %p23 = scmp.ge.s32.totalorder %s22, 2
    %s24 = scalar_select %p23, 0, %s22
    %s25 = sadd.s32 1, %s16
    %s26 = scalar_select %p23, %s25, %s16
    %p27 = scmp.ge.s32.totalorder %s26, 2
    %s28 = scalar_select %p27, 0, %s26
    %s30 = sadd.s32 %s29, 1
    %p33 = scmp.eq.s32.totalorder %s9, 3
    %p34 = scmp.ne.s32.totalorder %s29, %s31
    %p35 = scmp.eq.s32.totalorder %s9, 0
    %p36 = por %p34, %p35
    %p37 = scmp.ne.s32.totalorder %s29, %s31
    %p38 = scmp.eq.s32.totalorder %s14, 3
    %p39 = por %p37, %p38
    %p40 = scmp.ne.s32.totalorder %s31, %s32
    %p41 = scmp.eq.s32.totalorder %s14, 0
    %p42 = por %p40, %p41
    %p43 = scmp.ne.s32.totalorder %s31, %s32
    %p44 = scmp.eq.s32.totalorder %s15, 3
    %p45 = por %p43, %p44
    %p47 = scmp.ne.s32.totalorder %s32, %s46
    %p48 = scmp.eq.s32.totalorder %s15, 0
    %p49 = por %p47, %p48
    %s50 = ssub.s32 %s16, %s28
    %s51 = ssub.s32 %s17, %s24
    %s52 = sor.u32 %s50, %s51
    %p53 = scmp.eq.s32.totalorder %s52, 0
    %s55 = sadd.s32 %s54, 1
    %s56 = scalar_select %p53, %s54, %s55
    %p59 = pneg %p53
    %p60 = scmp.eq.s32.totalorder %s9, 3
    %p61 = por %p59, %p60
    %p62 = scmp.ne.s32.totalorder %s54, %s57
    %p63 = scmp.eq.s32.totalorder %s9, 0
    %p64 = por %p62, %p63
    %p65 = scmp.ne.s32.totalorder %s54, %s57
    %p66 = scmp.eq.s32.totalorder %s14, 3
    %p67 = por %p65, %p66
    %p68 = scmp.ne.s32.totalorder %s57, %s58
    %p69 = scmp.eq.s32.totalorder %s14, 0
    %p70 = por %p68, %p69
    %p71 = scmp.ne.s32.totalorder %s57, %s58
    %p72 = scmp.eq.s32.totalorder %s15, 3
    %p73 = por %p71, %p72
    %p75 = scmp.ne.s32.totalorder %s58, %s74
    %p76 = scmp.eq.s32.totalorder %s15, 0
    %p77 = por %p75, %p76
    %s78 = sadd.s32 %s17, 1
    %s79 = sadd.s32 %s24, 1
    %s80 = ssub.s32 %s16, %s28
    %s81 = ssub.s32 %s78, %s79
    %s82 = sor.u32 %s80, %s81
    %p83 = scmp.eq.s32.totalorder %s82, 0
    %s85 = sadd.s32 %s84, 1
    %s86 = scalar_select %p83, %s84, %s85
    %p89 = pneg %p83
    %p90 = scmp.eq.s32.totalorder %s9, 3
    %p91 = por %p89, %p90
    %p92 = scmp.ne.s32.totalorder %s84, %s87
    %p93 = scmp.eq.s32.totalorder %s9, 0
    %p94 = por %p92, %p93
    %p95 = scmp.ne.s32.totalorder %s84, %s87
    %p96 = scmp.eq.s32.totalorder %s14, 3
    %p97 = por %p95, %p96
    %p98 = scmp.ne.s32.totalorder %s87, %s88
    %p99 = scmp.eq.s32.totalorder %s14, 0
    %p100 = por %p98, %p99
    %p101 = scmp.ne.s32.totalorder %s87, %s88
    %p102 = scmp.eq.s32.totalorder %s15, 3
    %p103 = por %p101, %p102
    %p105 = scmp.ne.s32.totalorder %s88, %s104
    %p106 = scmp.eq.s32.totalorder %s15, 0
    %p107 = por %p105, %p106
    %p108 = scmp.le.s32.totalorder 1, %s9
    %p109 = scmp.lt.s32.totalorder %s9, 5
    %p110 = pnand %p108, %p109
    %p111 = pneg %p110
    // Predicated region
    $region9: #{ffm_concat2.3} parent=5 // pred_check
      _
    $region10: #{ffm_concat2.3} parent=5 // pred_check_branch
      %113 = sbr.rel (%p110) target = $region12
    $region11: #{ffm_concat2.3} parent=5 // pred_region
      %s114 = ssub.s32 %s9, 1
      // Predicated region
      $region13: #{ffm_concat2.3} parent=11 // pred_check
        %p115 = pneg %p42
      $region14: #{ffm_concat2.3} parent=11 // pred_check_branch
        %117 = sbr.rel (%p115) target = $region16
      $region15: #{ffm_concat2.3} parent=11 // pred_region
        _
      $region16: #{ffm_concat2.3} parent=11 // pred_fallthru
        _
    $region12: #{ffm_concat2.3} parent=5 // pred_fallthru
      _
    %p118 = scmp.lt.s32.totalorder %s9, 4
    // Predicated region
    $region17: #{ffm_concat2.3} parent=5 // pred_check
      %p119 = pneg %p118
    $region18: #{ffm_concat2.3} parent=5 // pred_check_branch
      %121 = sbr.rel (%p119) target = $region20
    $region19: #{ffm_concat2.3} parent=5 // pred_region
      // Predicated region
      $region21: #{ffm_concat2.3} parent=19 // pred_check
        %p122 = pneg %p64
      $region22: #{ffm_concat2.3} parent=19 // pred_check_branch
        %124 = sbr.rel (%p122) target = $region24
      $region23: #{ffm_concat2.3} parent=19 // pred_region
        %p125 = scmp.lt.s32.totalorder %s16, 1
        %s126 = scalar_select %p125, %s16, 1
        %p127 = scmp.lt.s32.totalorder %s17, 1
        %s128 = scalar_select %p127, %s17, 1
        %s129 = smul.addr %s126, 2
        %s130 = sadd.s32 %s128, %s129
        %s131 = smul.addr %s130, 8
        %s132 = scalar_lea.vmem %s1, %s131
      $region24: #{ffm_concat2.3} parent=19 // pred_fallthru
        _
    $region20: #{ffm_concat2.3} parent=5 // pred_fallthru
      _
    %p133 = scmp.le.s32.totalorder 1, %s9
    %p134 = scmp.lt.s32.totalorder %s9, 5
    %p135 = pnand %p133, %p134
    %p136 = pneg %p135
    // Predicated region
    $region25: #{ffm_concat2.3} parent=5 // pred_check
      _
    $region26: #{ffm_concat2.3} parent=5 // pred_check_branch
      %138 = sbr.rel (%p135) target = $region28
    $region27: #{ffm_concat2.3} parent=5 // pred_region
      %s139 = ssub.s32 %s9, 1
      %p140 = pneg %p42
      %p141 = pneg %p39
      %p142 = scmp.lt.s32.totalorder %s18, 1
      %s143 = scalar_select %p142, %s18, 1
      %p144 = scmp.lt.s32.totalorder %s19, 1
      %s145 = scalar_select %p144, %s19, 1
      %s146 = smul.addr %s143, 2
      %s147 = sadd.s32 %s145, %s146
      %s148 = smul.addr %s147, 8
      %s149 = scalar_lea.vmem %s1, %s148
      %p150 = pneg %p70
      %p151 = pneg %p67
      %p152 = pneg %p100
      %p153 = pneg %p97
      %s154 = sadd.s32 %s19, 1
      %p155 = scmp.lt.s32.totalorder %s18, 1
      %s156 = scalar_select %p155, %s18, 1
      %p157 = scmp.lt.s32.totalorder %s154, 2
      %s158 = scalar_select %p157, %s154, 2
      %s159 = smul.addr %s156, 3
      %s160 = sadd.s32 %s158, %s159
      %s161 = smul.addr %s160, 8
      %s162 = scalar_lea.vmem %s3, %s161
      %p163 = scmp.lt.s32.totalorder %s18, 1
      %s164 = scalar_select %p163, %s18, 1
      %p165 = scmp.lt.s32.totalorder %s19, 1
      %s166 = scalar_select %p165, %s19, 1
      %s167 = smul.addr %s164, 2
      %s168 = sadd.s32 %s166, %s167
      %s169 = smul.addr %s168, 8
      %s170 = scalar_lea.vmem %s1, %s169
      %s171 = sadd.s32 %s19, 1
      %p172 = scmp.lt.s32.totalorder %s18, 1
      %s173 = scalar_select %p172, %s18, 1
      %p174 = scmp.lt.s32.totalorder %s171, 2
      %s175 = scalar_select %p174, %s171, 2
      %s176 = smul.addr %s173, 3
      %s177 = sadd.s32 %s175, %s176
      %s178 = smul.addr %s177, 8
      %s179 = scalar_lea.vmem %s3, %s178
      %s180 = sadd.s32 %s19, 1
      %v181 = vld [vmem:[%s170] sm:$0xff]
      %v182 = vld [vmem:[%s0] sm:$0x1]
      %v184 = vlaneseq
      %v185 = vshrl.u32 %v184, 7
      %v186 = vsub.s32 0, %v185
      %v187 = vrot.slane %v182, %v186
      %v189 = vmul.f32 %v181, %v187
      %190 = vst [vmem:[%s179] sm:$0xff] %v189
      %s191 = sadd.s32 %s19, 1
      %p192 = scmp.lt.s32.totalorder %s18, 1
      %s193 = scalar_select %p192, %s18, 1
      %p194 = scmp.lt.s32.totalorder %s191, 2
      %s195 = scalar_select %p194, %s191, 2
      %s196 = smul.addr %s193, 3
      %s197 = sadd.s32 %s195, %s196
      %s198 = smul.addr %s197, 8
      %s199 = scalar_lea.vmem %s3, %s198
      // Predicated region
      $region29: #{ffm_concat2.3} parent=27 // pred_check
        %p200 = pneg %p97
      $region30: #{ffm_concat2.3} parent=27 // pred_check_branch
        %202 = sbr.rel (%p200) target = $region32
      $region31: #{ffm_concat2.3} parent=27 // pred_region
        %s203 = sadd.s32 %s19, 1
      $region32: #{ffm_concat2.3} parent=27 // pred_fallthru
        _
    $region28: #{ffm_concat2.3} parent=5 // pred_fallthru
      _
    %p204 = scmp.le.s32.totalorder 2, %s9
    // Predicated region
    $region33: #{ffm_concat2.3} parent=5 // pred_check
      %p205 = pneg %p204
    $region34: #{ffm_concat2.3} parent=5 // pred_check_branch
      %207 = sbr.rel (%p205) target = $region36
    $region35: #{ffm_concat2.3} parent=5 // pred_region
      %s208 = ssub.s32 %s9, 2
      // Predicated region
      $region37: #{ffm_concat2.3} parent=35 // pred_check
        %p209 = pneg %p103
      $region38: #{ffm_concat2.3} parent=35 // pred_check_branch
        %211 = sbr.rel (%p209) target = $region40
      $region39: #{ffm_concat2.3} parent=35 // pred_region
        %s212 = sadd.s32 %s21, 1
        %p213 = scmp.lt.s32.totalorder %s20, 1
        %s214 = scalar_select %p213, %s20, 1
        %p215 = scmp.lt.s32.totalorder %s212, 2
        %s216 = scalar_select %p215, %s212, 2
        %s217 = smul.addr %s214, 3
        %s218 = sadd.s32 %s216, %s217
        %s219 = smul.addr %s218, 8
        %s220 = scalar_lea.vmem %s3, %s219
      $region40: #{ffm_concat2.3} parent=35 // pred_fallthru
        _
    $region36: #{ffm_concat2.3} parent=5 // pred_fallthru
      _
  $region6: #{ffm_concat2.3} parent=0 // loop_footer
    %s13 = sadd.s32 1, %s9
  $region7: #{ffm_concat2.3} parent=0 // loop_footer_branch
    %8 = sbr.rel target = $region3
  $region8: #{ffm_concat2.3} parent=0 // loop_exit
    _

// kernel: ffm_concat2.2
$region0: #{ffm_concat2.2}
  #allocation0 [shape = 'u32[]', space=smem, size = 0x4, offset = 0x4, fixed_abs, tag = 'smem constant byte address 0x4 - core index']
  #allocation1 [shape = 'u32[144,128]{1,0:T(1,128)}', space=vmem, size = 0x12000, scoped, tag = 'internal scratch']
  %s0 = inlined_call_operand.vmem [shape: f32[1,1,128], index: 0, kind: input, shape index: {}]
  %s1 = inlined_call_operand.vmem [shape: f32[2,8,128], index: 1, kind: input, shape index: {}]
  %s2 = inlined_call_operand.vmem [shape: f32[2,24,128], index: 2, kind: output, shape index: {}]
  %s3 = sld [smem:[#allocation0]]
  $region41: #{ffm_concat2.2} parent=0
    _
  %s5 = ssub.s32 1, %s3
  %s6 = scalar_select 0, %s5, %s3
  loop: start=0, step=1, limit=4
  $region2: #{ffm_concat2.2} parent=0 // loop_pre_header
    _
  $region3: #{ffm_concat2.2} parent=0 // loop_header
    %s8 = sphi 0, %s12
    %p9 = scmp.ge.s32.totalorder %s8, 4
    %s15 = sphi 0, %s27
    %s16 = sphi 0, %s23
    %s17 = sphi 0, %s15
    %s18 = sphi 0, %s16
    %s19 = sphi 0, %s17
    %s20 = sphi 0, %s18
    %s28 = sphi 0, %s28
    %s30 = sphi 0, %s28
    %s31 = sphi 0, %s30
    %s45 = sphi 0, %s31
    %s53 = sphi 0, %s55
    %s56 = sphi 0, %s53
    %s57 = sphi 0, %s56
    %s73 = sphi 0, %s57
    %s81 = sphi 0, %s83
    %s84 = sphi 0, %s81
    %s85 = sphi 0, %s84
    %s101 = sphi 0, %s85
  $region4: #{ffm_concat2.2} parent=0 // loop_header_branch
    %11 = sbr.rel (%p9) target = $region8
  $region5: #{ffm_concat2.2} parent=0 // loop_body
    %s13 = ssub.s32 %s8, 1
    %s14 = ssub.s32 %s8, 2
    %s21 = sadd.s32 1, %s16
    %p22 = scmp.ge.s32.totalorder %s21, 1
    %s23 = scalar_select %p22, 0, %s21
    %s24 = sadd.s32 1, %s15
    %s25 = scalar_select %p22, %s24, %s15
    %p26 = scmp.ge.s32.totalorder %s25, 2
    %s27 = scalar_select %p26, 0, %s25
    %s29 = sadd.s32 %s28, 1
    %p32 = scmp.eq.s32.totalorder %s8, 1
    %p33 = scmp.ne.s32.totalorder %s28, %s30
    %p34 = scmp.eq.s32.totalorder %s8, 0
    %p35 = por %p33, %p34
    %p36 = scmp.ne.s32.totalorder %s28, %s30
    %p37 = scmp.eq.s32.totalorder %s13, 1
    %p38 = por %p36, %p37
    %p39 = scmp.ne.s32.totalorder %s30, %s31
    %p40 = scmp.eq.s32.totalorder %s13, 0
    %p41 = por %p39, %p40
    %p42 = scmp.ne.s32.totalorder %s30, %s31
    %p43 = scmp.eq.s32.totalorder %s14, 1
    %p44 = por %p42, %p43
    %p46 = scmp.ne.s32.totalorder %s31, %s45
    %p47 = scmp.eq.s32.totalorder %s14, 0
    %p48 = por %p46, %p47
    %s49 = ssub.s32 %s15, %s27
    %s50 = ssub.s32 %s16, %s23
    %s51 = sor.u32 %s49, %s50
    %p52 = scmp.eq.s32.totalorder %s51, 0
    %s54 = sadd.s32 %s53, 1
    %s55 = scalar_select %p52, %s53, %s54
    %p58 = pneg %p52
    %p59 = scmp.eq.s32.totalorder %s8, 1
    %p60 = por %p58, %p59
    %p61 = scmp.ne.s32.totalorder %s53, %s56
    %p62 = scmp.eq.s32.totalorder %s8, 0
    %p63 = por %p61, %p62
    %p64 = scmp.ne.s32.totalorder %s53, %s56
    %p65 = scmp.eq.s32.totalorder %s13, 1
    %p66 = por %p64, %p65
    %p67 = scmp.ne.s32.totalorder %s56, %s57
    %p68 = scmp.eq.s32.totalorder %s13, 0
    %p69 = por %p67, %p68
    %p70 = scmp.ne.s32.totalorder %s56, %s57
    %p71 = scmp.eq.s32.totalorder %s14, 1
    %p72 = por %p70, %p71
    %p74 = scmp.ne.s32.totalorder %s57, %s73
    %p75 = scmp.eq.s32.totalorder %s14, 0
    %p76 = por %p74, %p75
    %s77 = ssub.s32 %s15, %s27
    %s78 = ssub.s32 %s16, %s23
    %s79 = sor.u32 %s77, %s78
    %p80 = scmp.eq.s32.totalorder %s79, 0
    %s82 = sadd.s32 %s81, 1
    %s83 = scalar_select %p80, %s81, %s82
    %p86 = pneg %p80
    %p87 = scmp.eq.s32.totalorder %s8, 1
    %p88 = por %p86, %p87
    %p89 = scmp.ne.s32.totalorder %s81, %s84
    %p90 = scmp.eq.s32.totalorder %s8, 0
    %p91 = por %p89, %p90
    %p92 = scmp.ne.s32.totalorder %s81, %s84
    %p93 = scmp.eq.s32.totalorder %s13, 1
    %p94 = por %p92, %p93
    %p95 = scmp.ne.s32.totalorder %s84, %s85
    %p96 = scmp.eq.s32.totalorder %s13, 0
    %p97 = por %p95, %p96
    %p98 = scmp.ne.s32.totalorder %s84, %s85
    %p99 = scmp.eq.s32.totalorder %s14, 1
    %p100 = por %p98, %p99
    %p102 = scmp.ne.s32.totalorder %s85, %s101
    %p103 = scmp.eq.s32.totalorder %s14, 0
    %p104 = por %p102, %p103
    %p105 = scmp.le.s32.totalorder 1, %s8
    %p106 = scmp.lt.s32.totalorder %s8, 3
    %p107 = pnand %p105, %p106
    %p108 = pneg %p107
    // Predicated region
    $region9: #{ffm_concat2.2} parent=5 // pred_check
      _
    $region10: #{ffm_concat2.2} parent=5 // pred_check_branch
      %110 = sbr.rel (%p107) target = $region12
    $region11: #{ffm_concat2.2} parent=5 // pred_region
      %s111 = ssub.s32 %s8, 1
      // Predicated region
      $region13: #{ffm_concat2.2} parent=11 // pred_check
        %p112 = pneg %p41
      $region14: #{ffm_concat2.2} parent=11 // pred_check_branch
        %114 = sbr.rel (%p112) target = $region16
      $region15: #{ffm_concat2.2} parent=11 // pred_region
        _
      $region16: #{ffm_concat2.2} parent=11 // pred_fallthru
        _
    $region12: #{ffm_concat2.2} parent=5 // pred_fallthru
      _
    %p115 = scmp.lt.s32.totalorder %s8, 2
    // Predicated region
    $region17: #{ffm_concat2.2} parent=5 // pred_check
      %p116 = pneg %p115
    $region18: #{ffm_concat2.2} parent=5 // pred_check_branch
      %118 = sbr.rel (%p116) target = $region20
    $region19: #{ffm_concat2.2} parent=5 // pred_region
      // Predicated region
      $region21: #{ffm_concat2.2} parent=19 // pred_check
        %p119 = pneg %p63
      $region22: #{ffm_concat2.2} parent=19 // pred_check_branch
        %121 = sbr.rel (%p119) target = $region24
      $region23: #{ffm_concat2.2} parent=19 // pred_region
        %p122 = scmp.lt.s32.totalorder %s15, 1
        %s123 = scalar_select %p122, %s15, 1
        %p124 = scmp.lt.s32.totalorder %s16, 0
        %s125 = scalar_select %p124, %s16, 0
        %s126 = sadd.s32 %s125, %s123
        %s127 = smul.addr %s126, 8
        %s128 = scalar_lea.vmem %s1, %s127
      $region24: #{ffm_concat2.2} parent=19 // pred_fallthru
        _
    $region20: #{ffm_concat2.2} parent=5 // pred_fallthru
      _
    %p129 = scmp.le.s32.totalorder 1, %s8
    %p130 = scmp.lt.s32.totalorder %s8, 3
    %p131 = pnand %p129, %p130
    %p132 = pneg %p131
    // Predicated region
    $region25: #{ffm_concat2.2} parent=5 // pred_check
      _
    $region26: #{ffm_concat2.2} parent=5 // pred_check_branch
      %134 = sbr.rel (%p131) target = $region28
    $region27: #{ffm_concat2.2} parent=5 // pred_region
      %s135 = ssub.s32 %s8, 1
      %p136 = pneg %p41
      %p137 = pneg %p38
      %p138 = scmp.lt.s32.totalorder %s17, 1
      %s139 = scalar_select %p138, %s17, 1
      %p140 = scmp.lt.s32.totalorder %s18, 0
      %s141 = scalar_select %p140, %s18, 0
      %s142 = sadd.s32 %s141, %s139
      %s143 = smul.addr %s142, 8
      %s144 = scalar_lea.vmem %s1, %s143
      %p145 = pneg %p69
      %p146 = pneg %p66
      %p147 = pneg %p97
      %p148 = pneg %p94
      %p149 = scmp.lt.s32.totalorder %s17, 1
      %s150 = scalar_select %p149, %s17, 1
      %p151 = scmp.lt.s32.totalorder %s18, 2
      %s152 = scalar_select %p151, %s18, 2
      %s153 = smul.addr %s150, 3
      %s154 = sadd.s32 %s152, %s153
      %s155 = smul.addr %s154, 8
      %s156 = scalar_lea.vmem %s2, %s155
      %p157 = scmp.lt.s32.totalorder %s17, 1
      %s158 = scalar_select %p157, %s17, 1
      %p159 = scmp.lt.s32.totalorder %s18, 0
      %s160 = scalar_select %p159, %s18, 0
      %s161 = sadd.s32 %s160, %s158
      %s162 = smul.addr %s161, 8
      %s163 = scalar_lea.vmem %s1, %s162
      %p164 = scmp.lt.s32.totalorder %s17, 1
      %s165 = scalar_select %p164, %s17, 1
      %p166 = scmp.lt.s32.totalorder %s18, 2
      %s167 = scalar_select %p166, %s18, 2
      %s168 = smul.addr %s165, 3
      %s169 = sadd.s32 %s167, %s168
      %s170 = smul.addr %s169, 8
      %s171 = scalar_lea.vmem %s2, %s170
      %v172 = vld [vmem:[%s163] sm:$0xff]
      %v173 = vld [vmem:[%s0] sm:$0x1]
      %v175 = vlaneseq
      %v176 = vshrl.u32 %v175, 7
      %v177 = vsub.s32 0, %v176
      %v178 = vrot.slane %v173, %v177
      %v180 = vmul.f32 %v172, %v178
      %181 = vst [vmem:[%s171] sm:$0xff] %v180
      %p182 = scmp.lt.s32.totalorder %s17, 1
      %s183 = scalar_select %p182, %s17, 1
      %p184 = scmp.lt.s32.totalorder %s18, 2
      %s185 = scalar_select %p184, %s18, 2
      %s186 = smul.addr %s183, 3
      %s187 = sadd.s32 %s185, %s186
      %s188 = smul.addr %s187, 8
      %s189 = scalar_lea.vmem %s2, %s188
      // Predicated region
      $region29: #{ffm_concat2.2} parent=27 // pred_check
        %p190 = pneg %p94
      $region30: #{ffm_concat2.2} parent=27 // pred_check_branch
        %192 = sbr.rel (%p190) target = $region32
      $region31: #{ffm_concat2.2} parent=27 // pred_region
        _
      $region32: #{ffm_concat2.2} parent=27 // pred_fallthru
        _
    $region28: #{ffm_concat2.2} parent=5 // pred_fallthru
      _
    %p193 = scmp.le.s32.totalorder 2, %s8
    // Predicated region
    $region33: #{ffm_concat2.2} parent=5 // pred_check
      %p194 = pneg %p193
    $region34: #{ffm_concat2.2} parent=5 // pred_check_branch
      %196 = sbr.rel (%p194) target = $region36
    $region35: #{ffm_concat2.2} parent=5 // pred_region
      %s197 = ssub.s32 %s8, 2
      // Predicated region
      $region37: #{ffm_concat2.2} parent=35 // pred_check
        %p198 = pneg %p100
      $region38: #{ffm_concat2.2} parent=35 // pred_check_branch
        %200 = sbr.rel (%p198) target = $region40
      $region39: #{ffm_concat2.2} parent=35 // pred_region
        %p201 = scmp.lt.s32.totalorder %s19, 1
        %s202 = scalar_select %p201, %s19, 1
        %p203 = scmp.lt.s32.totalorder %s20, 2
        %s204 = scalar_select %p203, %s20, 2
        %s205 = smul.addr %s202, 3
        %s206 = sadd.s32 %s204, %s205
        %s207 = smul.addr %s206, 8
        %s208 = scalar_lea.vmem %s2, %s207
      $region40: #{ffm_concat2.2} parent=35 // pred_fallthru
        _
    $region36: #{ffm_concat2.2} parent=5 // pred_fallthru
      _
  $region6: #{ffm_concat2.2} parent=0 // loop_footer
    %s12 = sadd.s32 1, %s8
  $region7: #{ffm_concat2.2} parent=0 // loop_footer_branch
    %7 = sbr.rel target = $region3
  $region8: #{ffm_concat2.2} parent=0 // loop_exit
    _

</llo_original>
